<compile_context>
chip_gen: v6e
topology: v6e:2x2x1
jax: 0.10.0
libtpu: 0.0.40
codegen_flags: <defaults>
</compile_context>

<pallas_src>
import jax
import jax.numpy as jnp
import numpy as np
from jax.experimental import pallas as pl
from jax.experimental.pallas import tpu as pltpu


# ---------------------------------------------------------------------------
# Kernel
# ---------------------------------------------------------------------------
def softdot_kernel(h_ref, ctx_ref, w_in_t_ref, w_out_c_ref, w_out_q_ref,
                   htilde_ref, attn_ref):
    h = h_ref[...]                       # (Bt, Q)   input dtype (bf16 stays bf16)
    ctx = ctx_ref[...]                   # (Bt, S, C) input dtype

    # target = linear_in(h): (Bt, Q) @ (Q, C) -> (Bt, C), f32 accumulate on MXU.
    target_f32 = jnp.dot(h, w_in_t_ref[...], preferred_element_type=jnp.float32)

    # attn logits: bmm(context, target.unsqueeze(2)).squeeze(2) -> (Bt, S).
    # Keep the big elementwise pass in the context dtype (bf16 VALUs on v6e/v7x)
    # and accumulate the lane reduction in f32.  No-op cast for f32 inputs.
    target = target_f32.astype(ctx.dtype)
    logits = jnp.sum(ctx * target[:, None, :], axis=-1,
                     dtype=jnp.float32)                      # (Bt, S) f32

    # softmax over seq_len (nn.Softmax on a 2D input -> dim=1), stats in f32.
    # attn is a *returned* probability tensor, so use the exact reciprocal of
    # the (Bt,1) denominator (the approx EUP reciprocal broke the tolerance).
    m = jnp.max(logits, axis=-1, keepdims=True)
    e = jnp.exp(logits - m)
    denom = jnp.sum(e, axis=-1, keepdims=True)
    attn = e * (1.0 / denom)                                 # (Bt, S) f32

    # weighted_context = bmm(attn3, context).squeeze(1) -> (Bt, C).
    # Second ctx-sized pass: multiplies in ctx dtype, f32 accumulation.
    attn_c = attn.astype(ctx.dtype)
    weighted = jnp.sum(attn_c[:, :, None] * ctx, axis=1,
                       dtype=jnp.float32)                    # (Bt, C) f32

    # h_tilde = tanh(linear_out(cat(weighted_context, h))) in split form:
    # weighted @ w_out_c + h @ w_out_q  (no concat, no transpose in-kernel).
    proj = (jnp.dot(weighted.astype(w_out_c_ref.dtype), w_out_c_ref[...],
                    preferred_element_type=jnp.float32)
            + jnp.dot(h, w_out_q_ref[...],
                      preferred_element_type=jnp.float32))
    htilde_ref[...] = jnp.tanh(proj).astype(htilde_ref.dtype)
    attn_ref[...] = attn.astype(attn_ref.dtype)              # f32 out


# ---------------------------------------------------------------------------
# Tile / VMEM sizing helpers
# ---------------------------------------------------------------------------
def _vmem_capacity_bytes(default_bytes=64 << 20):
    """Trace-time VMEM capacity; conservative (v7x-sized) fallback."""
    try:
        return int(pltpu.get_tpu_info().vmem_capacity_bytes)
    except Exception:  # not on a TPU / interpret mode / older jax
        return default_bytes


def _sublane_pack(itemsize):
    """Rows per packed sublane group: 8 (f32), 16 (bf16), 32 (int8/fp8)."""
    return 8 * max(1, 4 // max(1, itemsize))


def _choose_batch_tile(B, S, C, ctx_itemsize, ctx_block_budget_bytes):
    pack = _sublane_pack(ctx_itemsize)
    per_row = max(1, S * C * ctx_itemsize)
    bt = ctx_block_budget_bytes // per_row

    if bt >= B:
        # Whole batch fits one context tile.  Still split into >= 2 tiles when
        # possible so the "parallel" batch axis gives the v7x megacore (and the
        # DMA pipeline) work to overlap; weights stay resident so this is free.
        if B >= 2 * pack:
            return int((pl.cdiv(B, 2) // pack) * pack)
        return int(B)

    # Tiled case: keep (Bt, Q)/(Bt, S) blocks sublane-pack aligned.  Never round
    # *up* past the budget (the old max(8, ...) could overshoot by 8x) except
    # when a single pack-aligned row slab is unavoidable; the derived
    # vmem_limit_bytes below accounts for whatever tile is actually chosen.
    bt = (bt // pack) * pack
    bt = max(pack, bt)
    return int(min(bt, B))


def _vmem_footprint_bytes(Bt, S, C, Q, ctx_itemsize, h_itemsize,
                          weight_bytes, weight_buffers):
    ctx_block = Bt * S * C * ctx_itemsize
    # context: 2x for double-buffered DMA, plus ~2 context-sized elementwise
    # temporaries (budgeted at f32 in case Mosaic materializes the promoted
    # accumulation copies rather than fusing them per-vreg).
    ctx_cost = 2 * ctx_block + 2 * Bt * S * C * 4
    small = 2 * (Bt * Q * h_itemsize        # h input block
                 + Bt * Q * h_itemsize      # h_tilde output block
                 + Bt * S * 4)              # attn output block (f32)
    return ctx_cost + small + weight_buffers * weight_bytes


# ---------------------------------------------------------------------------
# Wrapper
# ---------------------------------------------------------------------------
def soft_dot_attention(h, context, w_in, w_out, *, batch_tile=None):
    B, Q = h.shape
    Bc, S, C = context.shape
    assert Bc == B
    assert w_in.shape == (C, Q)
    assert w_out.shape == (Q, Q + C)

    # Pre-transpose / split weights once in the wrapper (XLA const-folds/fuses);
    # no XLU transposes and no lane-axis concat inside the kernel.
    w_in_t = w_in.T                # (Q, C)  multiplies h
    w_out_c = w_out[:, :C].T       # (C, Q)  multiplies weighted_context
    w_out_q = w_out[:, C:].T       # (Q, Q)  multiplies h

    ctx_itemsize = jnp.dtype(context.dtype).itemsize
    h_itemsize = jnp.dtype(h.dtype).itemsize
    w_itemsize = jnp.dtype(w_in.dtype).itemsize

    # Context-tile budget sized per generation: ~12.8 MiB on 128 MiB VMEM parts
    # (v5e/v6e), ~6.4 MiB on 64 MiB v7x.
    vmem_cap = _vmem_capacity_bytes()
    ctx_block_budget = max(2 << 20, vmem_cap // 10)

    pack = _sublane_pack(ctx_itemsize)
    if batch_tile is None:
        Bt = _choose_batch_tile(B, S, C, ctx_itemsize, ctx_block_budget)
    else:
        Bt = int(min(batch_tile, B))
        if Bt < B:                               # keep tiled blocks pack-aligned
            Bt = max(pack, (Bt // pack) * pack)
    grid = (pl.cdiv(B, Bt),)

    # Resident weights: constant index_maps avoid re-DMA; when weights are big
    # also drop them to a single buffer so they don't steal context-tile VMEM.
    weight_bytes = (Q * C + C * Q + Q * Q) * w_itemsize
    weights_big = weight_bytes > (4 << 20)
    weight_buffers = 1 if weights_big else 2
    wkw = dict(pipeline_mode=pl.Buffered(1)) if weights_big else {}

    footprint = _vmem_footprint_bytes(Bt, S, C, Q, ctx_itemsize, h_itemsize,
                                      weight_bytes, weight_buffers)
    vmem_limit = int(min(max(footprint + (4 << 20), 16 << 20), 128 << 20))

    out_shape = (
        jax.ShapeDtypeStruct((B, Q), h.dtype),       # h_tilde
        jax.ShapeDtypeStruct((B, S), jnp.float32),   # attn (f32; consumers may
                                                     # downcast to save writeback)
    )

    return pl.pallas_call(
        softdot_kernel,
        out_shape=out_shape,
        grid=grid,
        in_specs=[
            pl.BlockSpec((Bt, Q), lambda i: (i, 0)),         # h tile
            pl.BlockSpec((Bt, S, C), lambda i: (i, 0, 0)),   # context tile
            pl.BlockSpec((Q, C), lambda i: (0, 0), **wkw),   # w_in_t  (resident)
            pl.BlockSpec((C, Q), lambda i: (0, 0), **wkw),   # w_out_c (resident)
            pl.BlockSpec((Q, Q), lambda i: (0, 0), **wkw),   # w_out_q (resident)
        ],
        out_specs=(
            pl.BlockSpec((Bt, Q), lambda i: (i, 0)),
            pl.BlockSpec((Bt, S), lambda i: (i, 0)),
        ),
        compiler_params=pltpu.CompilerParams(
            dimension_semantics=("parallel",),   # batch tiles shard over TCs
            vmem_limit_bytes=vmem_limit,
        ),
    )(h, context, w_in_t, w_out_c, w_out_q)


# ---------------------------------------------------------------------------
# Pure-JAX reference (mask=None, output_tilde=True, output_prob=True)
# ---------------------------------------------------------------------------
def soft_dot_attention_ref(h, context, w_in, w_out):
    target = h @ w_in.T                                    # (B, C)
    logits = jnp.einsum("bsc,bc->bs", context, target)     # (B, S)
    attn = jax.nn.softmax(logits, axis=-1)
    weighted = jnp.einsum("bs,bsc->bc", attn, context)     # (B, C)
    h_tilde = jnp.tanh(jnp.concatenate([weighted, h], axis=-1) @ w_out.T)
    return h_tilde, attn


def _run_case(key, B, S, Q, C, batch_tile=None):
    k_h, k_ctx, k_win, k_wout = jax.random.split(key, 4)
    h = jax.random.normal(k_h, (B, Q), dtype=jnp.float32)
    context = jax.random.normal(k_ctx, (B, S, C), dtype=jnp.float32)
    w_in = 0.1 * jax.random.normal(k_win, (C, Q), dtype=jnp.float32)
    w_out = 0.1 * jax.random.normal(k_wout, (Q, Q + C), dtype=jnp.float32)

    h_tilde, attn = jax.block_until_ready(
        soft_dot_attention(h, context, w_in, w_out, batch_tile=batch_tile))
    h_tilde_ref, attn_ref = soft_dot_attention_ref(h, context, w_in, w_out)

    np.testing.assert_allclose(np.asarray(h_tilde), np.asarray(h_tilde_ref),
                               rtol=1e-4, atol=1e-4)
    np.testing.assert_allclose(np.asarray(attn), np.asarray(attn_ref),
                               rtol=1e-4, atol=1e-4)


if __name__ == "__main__":
    key = jax.random.PRNGKey(0)
    k1, k2, k3 = jax.random.split(key, 3)

    # Case 1: the module's toy shape (B too small to split -> single grid step).
    _run_case(k1, B=2, S=8, Q=32, C=32)

    # Case 2: explicit batch tile -> 3-step pipelined grid, weights resident.
    _run_case(k2, B=24, S=16, Q=64, C=64, batch_tile=8)

    # Case 3: auto tile selection (batch split for megacore / pipelining).
    _run_case(k3, B=32, S=16, Q=64, C=64)

    print("KERNEL_OK")
</pallas_src>

<mosaic_0001>
module attributes {stable_mosaic.version = 11 : i64} {
  func.func @softdot_kernel(%arg0: i32, %arg1: memref<2x32xf32, #tpu.memory_space<vmem>>, %arg2: memref<2x8x32xf32, #tpu.memory_space<vmem>>, %arg3: memref<32x32xf32, #tpu.memory_space<vmem>>, %arg4: memref<32x32xf32, #tpu.memory_space<vmem>>, %arg5: memref<32x32xf32, #tpu.memory_space<vmem>>, %arg6: memref<2x32xf32, #tpu.memory_space<vmem>>, %arg7: memref<2x8xf32, #tpu.memory_space<vmem>>) attributes {dimension_semantics = [#tpu.dimension_semantics<parallel>], iteration_bounds = array<i64: 1>, scalar_prefetch = 0 : i64, scratch_operands = 0 : i64, tpu.core_type = #tpu.core_type<tc>, window_params = [{transform_indices = @transform_0, window_bounds = array<i64: 2, 32>}, {transform_indices = @transform_1, window_bounds = array<i64: 2, 8, 32>}, {pipeline_mode = #tpu.pipeline_mode<synchronous>, transform_indices = @transform_2, window_bounds = array<i64: 32, 32>}, {pipeline_mode = #tpu.pipeline_mode<synchronous>, transform_indices = @transform_3, window_bounds = array<i64: 32, 32>}, {pipeline_mode = #tpu.pipeline_mode<synchronous>, transform_indices = @transform_4, window_bounds = array<i64: 32, 32>}, {transform_indices = @transform_5, window_bounds = array<i64: 2, 32>}, {transform_indices = @transform_6, window_bounds = array<i64: 2, 8>}]} {
    %c0 = arith.constant 0 : index
    %c0_0 = arith.constant 0 : index
    %0 = vector.load %arg1[%c0, %c0_0] : memref<2x32xf32, #tpu.memory_space<vmem>>, vector<2x32xf32>
    %c0_1 = arith.constant 0 : index
    %c0_2 = arith.constant 0 : index
    %c0_3 = arith.constant 0 : index
    %1 = vector.load %arg2[%c0_1, %c0_2, %c0_3] : memref<2x8x32xf32, #tpu.memory_space<vmem>>, vector<2x8x32xf32>
    %c0_4 = arith.constant 0 : index
    %c0_5 = arith.constant 0 : index
    %2 = vector.load %arg3[%c0_4, %c0_5] : memref<32x32xf32, #tpu.memory_space<vmem>>, vector<32x32xf32>
    %cst = arith.constant dense<0.000000e+00> : vector<2x32xf32>
    %3 = tpu.matmul %0, %2, %cst {dimension_numbers = #tpu.dot_dimension_numbers<[1], [0], [0], [1], [0, 0, 1, 1], [], []>} : vector<2x32xf32>, vector<32x32xf32>, vector<2x32xf32> -> vector<2x32xf32>
    %4 = vector.shape_cast %3 : vector<2x32xf32> to vector<2x1x32xf32>
    %5 = vector.broadcast %4 : vector<2x1x32xf32> to vector<2x8x32xf32>
    %6 = arith.mulf %1, %5 : vector<2x8x32xf32>
    %cst_6 = arith.constant dense<0.000000e+00> : vector<2x8xf32>
    %7 = vector.multi_reduction <add>, %6, %cst_6 [2] : vector<2x8x32xf32> to vector<2x8xf32>
    %cst_7 = arith.constant dense<0xFF800000> : vector<2xf32>
    %8 = vector.multi_reduction <maximumf>, %7, %cst_7 [1] : vector<2x8xf32> to vector<2xf32>
    %9 = vector.shape_cast %8 : vector<2xf32> to vector<2x1xf32>
    %10 = vector.broadcast %9 : vector<2x1xf32> to vector<2x8xf32>
    %11 = arith.subf %7, %10 : vector<2x8xf32>
    %12 = math.exp %11 : vector<2x8xf32>
    %cst_8 = arith.constant dense<0.000000e+00> : vector<2xf32>
    %13 = vector.multi_reduction <add>, %12, %cst_8 [1] : vector<2x8xf32> to vector<2xf32>
    %14 = vector.shape_cast %13 : vector<2xf32> to vector<2x1xf32>
    %cst_9 = arith.constant 1.000000e+00 : f32
    %15 = vector.broadcast %cst_9 : f32 to vector<2x1xf32>
    %16 = arith.divf %15, %14 : vector<2x1xf32>
    %17 = vector.broadcast %16 : vector<2x1xf32> to vector<2x8xf32>
    %18 = arith.mulf %12, %17 : vector<2x8xf32>
    %19 = vector.shape_cast %18 : vector<2x8xf32> to vector<2x8x1xf32>
    %20 = vector.broadcast %19 : vector<2x8x1xf32> to vector<2x8x32xf32>
    %21 = arith.mulf %20, %1 : vector<2x8x32xf32>
    %cst_10 = arith.constant dense<0.000000e+00> : vector<2x32xf32>
    %22 = vector.multi_reduction <add>, %21, %cst_10 [1] : vector<2x8x32xf32> to vector<2x32xf32>
    %c0_11 = arith.constant 0 : index
    %c0_12 = arith.constant 0 : index
    %23 = vector.load %arg4[%c0_11, %c0_12] : memref<32x32xf32, #tpu.memory_space<vmem>>, vector<32x32xf32>
    %cst_13 = arith.constant dense<0.000000e+00> : vector<2x32xf32>
    %24 = tpu.matmul %22, %23, %cst_13 {dimension_numbers = #tpu.dot_dimension_numbers<[1], [0], [0], [1], [0, 0, 1, 1], [], []>} : vector<2x32xf32>, vector<32x32xf32>, vector<2x32xf32> -> vector<2x32xf32>
    %c0_14 = arith.constant 0 : index
    %c0_15 = arith.constant 0 : index
    %25 = vector.load %arg5[%c0_14, %c0_15] : memref<32x32xf32, #tpu.memory_space<vmem>>, vector<32x32xf32>
    %cst_16 = arith.constant dense<0.000000e+00> : vector<2x32xf32>
    %26 = tpu.matmul %0, %25, %cst_16 {dimension_numbers = #tpu.dot_dimension_numbers<[1], [0], [0], [1], [0, 0, 1, 1], [], []>} : vector<2x32xf32>, vector<32x32xf32>, vector<2x32xf32> -> vector<2x32xf32>
    %27 = arith.addf %24, %26 : vector<2x32xf32>
    %28 = math.tanh %27 : vector<2x32xf32>
    %c0_17 = arith.constant 0 : index
    %c0_18 = arith.constant 0 : index
    %29 = vector.load %arg6[%c0_17, %c0_18] : memref<2x32xf32, #tpu.memory_space<vmem>>, vector<2x32xf32>
    tpu.vector_store %arg6[%c0_17, %c0_18], %28 {strides = array<i32>} : memref<2x32xf32, #tpu.memory_space<vmem>>, vector<2x32xf32>,
    %c0_19 = arith.constant 0 : index
    %c0_20 = arith.constant 0 : index
    %30 = vector.load %arg7[%c0_19, %c0_20] : memref<2x8xf32, #tpu.memory_space<vmem>>, vector<2x8xf32>
    tpu.vector_store %arg7[%c0_19, %c0_20], %18 {strides = array<i32>} : memref<2x8xf32, #tpu.memory_space<vmem>>, vector<2x8xf32>,
    return
  }
  func.func @transform_0(%arg0: i32) -> (i32, i32) {
    %c0_i32 = arith.constant 0 : i32
    %c0_i32_0 = arith.constant 0 : i32
    return %arg0, %c0_i32 : i32, i32
  }
  func.func @transform_1(%arg0: i32) -> (i32, i32, i32) {
    %c0_i32 = arith.constant 0 : i32
    %c0_i32_0 = arith.constant 0 : i32
    %c0_i32_1 = arith.constant 0 : i32
    return %arg0, %c0_i32, %c0_i32_0 : i32, i32, i32
  }
  func.func @transform_2(%arg0: i32) -> (i32, i32) {
    %c0_i32 = arith.constant 0 : i32
    %c0_i32_0 = arith.constant 0 : i32
    %c0_i32_1 = arith.constant 0 : i32
    return %c0_i32, %c0_i32_0 : i32, i32
  }
  func.func @transform_3(%arg0: i32) -> (i32, i32) {
    %c0_i32 = arith.constant 0 : i32
    %c0_i32_0 = arith.constant 0 : i32
    %c0_i32_1 = arith.constant 0 : i32
    return %c0_i32, %c0_i32_0 : i32, i32
  }
  func.func @transform_4(%arg0: i32) -> (i32, i32) {
    %c0_i32 = arith.constant 0 : i32
    %c0_i32_0 = arith.constant 0 : i32
    %c0_i32_1 = arith.constant 0 : i32
    return %c0_i32, %c0_i32_0 : i32, i32
  }
  func.func @transform_5(%arg0: i32) -> (i32, i32) {
    %c0_i32 = arith.constant 0 : i32
    %c0_i32_0 = arith.constant 0 : i32
    return %arg0, %c0_i32 : i32, i32
  }
  func.func @transform_6(%arg0: i32) -> (i32, i32) {
    %c0_i32 = arith.constant 0 : i32
    %c0_i32_0 = arith.constant 0 : i32
    return %arg0, %c0_i32 : i32, i32
  }
}

</mosaic_0001>

<llo_original>
// kernel: tpu_custom_call.1
$region0: #{tpu_custom_call.1}
  #allocation0 [shape = 'u32[]', space=smem, size = 0x4, offset = 0x4, fixed_abs, tag = 'smem constant byte address 0x4 - core index']
  #allocation1 [shape = 'u32[144,128]{1,0:T(1,128)}', space=vmem, size = 0x12000, scoped, tag = 'internal scratch']
  %s0 = inlined_call_operand.hbm [shape: f32[2,32], index: 0, kind: input, shape index: {}]
  %s1 = inlined_call_operand.hbm [shape: f32[2,8,32], index: 1, kind: input, shape index: {}]
  %s2 = inlined_call_operand.hbm [shape: f32[32,32], index: 2, kind: input, shape index: {}]
  %s3 = inlined_call_operand.hbm [shape: f32[32,32], index: 3, kind: input, shape index: {}]
  %s4 = inlined_call_operand.hbm [shape: f32[32,32], index: 4, kind: input, shape index: {}]
  %s5 = inlined_call_operand.hbm [shape: f32[2,32], index: 5, kind: output, shape index: {0}]
  %s6 = inlined_call_operand.hbm [shape: f32[2,8], index: 6, kind: output, shape index: {1}]
  %7 = xla_tuple %s5, %s6
  %s8 = sld [smem:[#allocation0]]
  $region58: #{tpu_custom_call.1} parent=0
    _
  %s10 = ssub.s32 1, %s8
  %s11 = scalar_select 0, %s10, %s8
  $region1: #{tpu_custom_call.1} parent=0
    #allocation2 [shape = 'u8[1024]{0}', space=vmem, size = 0x400, scoped, tag = 'input window, operand 0, single buffered']
    #allocation3 [shape = 's32[1]{0}', space=sflag, size = 0x4, scoped, tag = 'scoped memory for tpu_custom_call.1']
    #allocation4 [shape = 's32[1]{0}', space=sflag, size = 0x4, scoped, tag = 'scoped memory for tpu_custom_call.1']
    #allocation5 [shape = 'u8[8192]{0}', space=vmem, size = 0x2000, scoped, tag = 'input window, operand 1, single buffered']
    #allocation6 [shape = 's32[1]{0}', space=sflag, size = 0x4, scoped, tag = 'scoped memory for tpu_custom_call.1']
    #allocation7 [shape = 'u8[16384]{0}', space=vmem, size = 0x4000, scoped, tag = 'input window, operand 2, single buffered']
    #allocation8 [shape = 'u8[16384]{0}', space=vmem, size = 0x4000, scoped, tag = 'input window, operand 3, single buffered']
    #allocation9 [shape = 's32[1]{0}', space=sflag, size = 0x4, scoped, tag = 'scoped memory for tpu_custom_call.1']
    #allocation10 [shape = 'u8[16384]{0}', space=vmem, size = 0x4000, scoped, tag = 'input window, operand 4, single buffered']
    #allocation11 [shape = 'u8[1024]{0}', space=vmem, size = 0x400, scoped, tag = 'output window, operand 0, single buffered']
    #allocation12 [shape = 'u8[1024]{0}', space=vmem, size = 0x400, scoped, tag = 'output window, operand 1, single buffered']
    #allocation13 [shape = 's32[1]{0}', space=sflag, size = 0x4, scoped, tag = 'scoped memory for tpu_custom_call.1']
    %12 = vsyncpa [#allocation3], 0
    %13 = vsyncpa [#allocation6], 0
    %14 = vsyncpa [#allocation9], 0
    %15 = vsyncpa [#allocation4], 0
    %16 = vsyncpa [#allocation13], 0
    // Predicated region
    $region2: #{tpu_custom_call.1} parent=1 // pred_check
      _
    $region3: #{tpu_custom_call.1} parent=1 // pred_check_branch
      %18 = sbr.rel (0) target = $region5
    $region4: #{tpu_custom_call.1} parent=1 // pred_region
      %s20 = ssub.s32 32, 32
      %21 = vsyncadd [#allocation3], %s20
      %s23 = sshll.u32 [#allocation2], 4
      %s24 = int_to_ptr.vmem [resolvable:$true] %s23
      %26 = dma.hbm_to_vmem [thread:$0]  %s0, 32, %s24, [#allocation3]
    $region5: #{tpu_custom_call.1} parent=1 // pred_fallthru
      _
    // Predicated region
    $region6: #{tpu_custom_call.1} parent=1 // pred_check
      _
    $region7: #{tpu_custom_call.1} parent=1 // pred_check_branch
      %28 = sbr.rel (0) target = $region9
    $region8: #{tpu_custom_call.1} parent=1 // pred_region
      %s30 = ssub.s32 256, 256
      %31 = vsyncadd [#allocation6], %s30
      %s32 = sshll.u32 [#allocation5], 4
      %s33 = int_to_ptr.vmem [resolvable:$true] %s32
      %38 = dma.hbm_to_vmem [thread:$0]  %s1, 256, %s33, [#allocation6], 128, 128, 8
    $region9: #{tpu_custom_call.1} parent=1 // pred_fallthru
      _
    // Predicated region
    $region10: #{tpu_custom_call.1} parent=1 // pred_check
      _
    $region11: #{tpu_custom_call.1} parent=1 // pred_check_branch
      %40 = sbr.rel (0) target = $region13
    $region12: #{tpu_custom_call.1} parent=1 // pred_region
      %s42 = ssub.s32 512, 512
      %43 = vsyncadd [#allocation6], %s42
      %s44 = sshll.u32 [#allocation7], 4
      %s45 = int_to_ptr.vmem [resolvable:$true] %s44
      %50 = dma.hbm_to_vmem [thread:$0]  %s2, 512, %s45, [#allocation6], 128, 128, 8
    $region13: #{tpu_custom_call.1} parent=1 // pred_fallthru
      _
    // Predicated region
    $region14: #{tpu_custom_call.1} parent=1 // pred_check
      _
    $region15: #{tpu_custom_call.1} parent=1 // pred_check_branch
      %52 = sbr.rel (0) target = $region17
    $region16: #{tpu_custom_call.1} parent=1 // pred_region
      %s54 = ssub.s32 512, 512
      %55 = vsyncadd [#allocation9], %s54
      %s56 = sshll.u32 [#allocation8], 4
      %s57 = int_to_ptr.vmem [resolvable:$true] %s56
      %62 = dma.hbm_to_vmem [thread:$0]  %s3, 512, %s57, [#allocation9], 128, 128, 8
    $region17: #{tpu_custom_call.1} parent=1 // pred_fallthru
      _
    // Predicated region
    $region18: #{tpu_custom_call.1} parent=1 // pred_check
      _
    $region19: #{tpu_custom_call.1} parent=1 // pred_check_branch
      %64 = sbr.rel (0) target = $region21
    $region20: #{tpu_custom_call.1} parent=1 // pred_region
      %s66 = ssub.s32 512, 512
      %67 = vsyncadd [#allocation9], %s66
      %s68 = sshll.u32 [#allocation10], 4
      %s69 = int_to_ptr.vmem [resolvable:$true] %s68
      %74 = dma.hbm_to_vmem [thread:$0]  %s4, 512, %s69, [#allocation9], 128, 128, 8
    $region21: #{tpu_custom_call.1} parent=1 // pred_fallthru
      _
    // Predicated region
    $region22: #{tpu_custom_call.1} parent=1 // pred_check
      _
    $region23: #{tpu_custom_call.1} parent=1 // pred_check_branch
      %76 = sbr.rel (0) target = $region25
    $region24: #{tpu_custom_call.1} parent=1 // pred_region
      %77 = dma.done [#allocation3], 32
    $region25: #{tpu_custom_call.1} parent=1 // pred_fallthru
      _
    // Predicated region
    $region26: #{tpu_custom_call.1} parent=1 // pred_check
      _
    $region27: #{tpu_custom_call.1} parent=1 // pred_check_branch
      %79 = sbr.rel (0) target = $region29
    $region28: #{tpu_custom_call.1} parent=1 // pred_region
      %80 = dma.done [#allocation6], 256
    $region29: #{tpu_custom_call.1} parent=1 // pred_fallthru
      _
    // Predicated region
    $region30: #{tpu_custom_call.1} parent=1 // pred_check
      _
    $region31: #{tpu_custom_call.1} parent=1 // pred_check_branch
      %82 = sbr.rel (0) target = $region33
    $region32: #{tpu_custom_call.1} parent=1 // pred_region
      %83 = dma.done [#allocation6], 512
    $region33: #{tpu_custom_call.1} parent=1 // pred_fallthru
      _
    // Predicated region
    $region34: #{tpu_custom_call.1} parent=1 // pred_check
      _
    $region35: #{tpu_custom_call.1} parent=1 // pred_check_branch
      %85 = sbr.rel (0) target = $region37
    $region36: #{tpu_custom_call.1} parent=1 // pred_region
      %86 = dma.done [#allocation9], 512
    $region37: #{tpu_custom_call.1} parent=1 // pred_fallthru
      _
    // Predicated region
    $region38: #{tpu_custom_call.1} parent=1 // pred_check
      _
    $region39: #{tpu_custom_call.1} parent=1 // pred_check_branch
      %88 = sbr.rel (0) target = $region41
    $region40: #{tpu_custom_call.1} parent=1 // pred_region
      %89 = dma.done [#allocation9], 512
    $region41: #{tpu_custom_call.1} parent=1 // pred_fallthru
      _
    %v90 = vld [vmem:[#allocation2] sm:$0x3]
    %v91 = vld [vmem:[#allocation5] sm:$0xff]
    %v92 = vld [vmem:[#allocation5 + $0x8] sm:$0xff]
    %v93 = vld [vmem:[#allocation7] sm:$0xff]
    %v94 = vld [vmem:[#allocation7 + $0x8] sm:$0xff]
    %v95 = vld [vmem:[#allocation7 + $0x10] sm:$0xff]
    %v96 = vld [vmem:[#allocation7 + $0x18] sm:$0xff]
    %vm97 = vcmask 261120
    %v99 = vsel %vm97, %v90, 0
    %101 = vmatprep.subr.mxu0 0.0
    %102 = vmatpush1.msra.mxu0 0.0
    %103 = vmatprep.subr.mxu0 0.0
    %104 = vmatpush1.msra.mxu0 0.0
    %105 = vmatprep.subr.mxu0 0.0
    %106 = vmatpush1.msra.mxu0 0.0
    %107 = vmatprep.subr.mxu0 0.0
    %108 = vmatpush1.msra.mxu0 0.0
    %109 = vmatprep.subr.mxu0 0.0
    %110 = vmatpush1.msra.mxu0 0.0
    %111 = vmatprep.subr.mxu0 0.0
    %112 = vmatpush1.msra.mxu0 0.0
    %113 = vmatprep.subr.mxu0 0.0
    %114 = vmatpush1.msra.mxu0 0.0
    %115 = vmatprep.subr.mxu0 0.0
    %116 = vmatpush1.msra.mxu0 0.0
    %117 = vmatprep.subr.mxu0 0.0
    %118 = vmatpush1.msra.mxu0 0.0
    %119 = vmatprep.subr.mxu0 0.0
    %120 = vmatpush1.msra.mxu0 0.0
    %121 = vmatprep.subr.mxu0 0.0
    %122 = vmatpush1.msra.mxu0 0.0
    %123 = vmatprep.subr.mxu0 0.0
    %124 = vmatpush1.msra.mxu0 0.0
    %125 = vmatprep.subr.mxu0 0.0
    %126 = vmatpush1.msra.mxu0 %v96
    %127 = vmatprep.subr.mxu0 0.0
    %128 = vmatpush1.msra.mxu0 %v95
    %129 = vmatprep.subr.mxu0 0.0
    %130 = vmatpush1.msra.mxu0 %v94
    %131 = vmatprep.subr.mxu0 0.0
    %132 = vmatpush1.msra.mxu0 %v93
    %133 = vmatprep.subr.mxu0 0.0
    %134 = vmatpush2.msra.mxu0 0.0
    %135 = vmatprep.subr.mxu0 0.0
    %136 = vmatpush2.msra.mxu0 0.0
    %137 = vmatprep.subr.mxu0 0.0
    %138 = vmatpush2.msra.mxu0 0.0
    %139 = vmatprep.subr.mxu0 0.0
    %140 = vmatpush2.msra.mxu0 0.0
    %141 = vmatprep.subr.mxu0 0.0
    %142 = vmatpush2.msra.mxu0 0.0
    %143 = vmatprep.subr.mxu0 0.0
    %144 = vmatpush2.msra.mxu0 0.0
    %145 = vmatprep.subr.mxu0 0.0
    %146 = vmatpush2.msra.mxu0 0.0
    %147 = vmatprep.subr.mxu0 0.0
    %148 = vmatpush2.msra.mxu0 0.0
    %149 = vmatprep.subr.mxu0 0.0
    %150 = vmatpush2.msra.mxu0 0.0
    %151 = vmatprep.subr.mxu0 0.0
    %152 = vmatpush2.msra.mxu0 0.0
    %153 = vmatprep.subr.mxu0 0.0
    %154 = vmatpush2.msra.mxu0 0.0
    %155 = vmatprep.subr.mxu0 0.0
    %156 = vmatpush2.msra.mxu0 0.0
    %157 = vmatprep.subr.mxu0 0.0
    %158 = vmatpush2.msra.mxu0 0.0
    %159 = vmatprep.subr.mxu0 0.0
    %160 = vmatpush2.msra.mxu0 0.0
    %161 = vmatprep.subr.mxu0 0.0
    %162 = vmatpush2.msra.mxu0 0.0
    %163 = vmatprep.subr.mxu0 0.0
    %164 = vmatpush2.msra.mxu0 0.0
    %165 = vmatprep.mubr.f32.mxu0 0.0
    %166 = vmatmul.mubr.f32.gmra.mxu0 %v99
    %v167 = vpop.f32.mrf.mxu0
    %v168 = vadd.f32 0.0, %v167
    %v169 = vpop.f32.mrf.mxu0
    %170 = vdwg.mxu0
    %v173 = vunpack.c.l.s4 1966171168
    %v174 = vunpack.c.0.s8 %v173
    %v175 = vlaneseq
    %v176 = vshrl.u32 %v175, 7
    %v177 = vsub.s32 %v174, %v176
    %v178 = vrot.slane %v168, %v177
    %v179 = vcombine.high %v178, %v178
    %v181 = vunpack.c.l.s4 1966171168
    %v182 = vunpack.c.0.s8 %v181
    %v183 = vlaneseq
    %v184 = vshrl.u32 %v183, 7
    %v185 = vsub.s32 %v182, %v184
    %v186 = vrot.slane %v178, %v185
    %v188 = vunpack.c.l.s4 1966171168
    %v189 = vunpack.c.0.s8 %v188
    %v190 = vlaneseq
    %v191 = vshrl.u32 %v190, 7
    %v192 = vsub.s32 %v189, %v191
    %v193 = vrot.slane %v179, %v192
    %v194 = vlaneseq
    %v195 = vshrl.u32 %v194, 7
    %v196 = vsub.s32 0, %v195
    %v197 = vrot.slane %v186, %v196
    %v198 = vlaneseq
    %v199 = vshrl.u32 %v198, 7
    %v200 = vsub.s32 0, %v199
    %v201 = vrot.slane %v193, %v200
    %v204 = vmul.f32 %v91, %v197
    %v205 = vmul.f32 %v92, %v201
    %v206 = vsel %vm97, %v204, 0.0
    %207 = vadd.xlane.f32.xlu0 %v206
    %v208 = vpop.xlane.xlu0 %207
    %v209 = vsel %vm97, %v205, 0.0
    %210 = vadd.xlane.f32.xlu0 %v209
    %v211 = vpop.xlane.xlu0 %210
    %v214 = vlaneseq
    %v215 = vand.u32 %v214, 127
    %v216 = vlaneseq
    %v217 = vshrl.u32 %v216, 7
    %v218 = vsub.s32 %v215, %v217
    %v219 = vrot.slane %v208, %v218
    %v220 = vlaneseq
    %v221 = vshrl.u32 %v220, 7
    %v222 = vsub.s32 %v215, %v221
    %v223 = vrot.slane %v211, %v222
    %vm224 = vcmask 1041409
    %v225 = vsel %vm224, %v223, %v219
    %vm227 = vcmask 58368
    %v228 = vsel %vm227, %v225, -inf
    %229 = vmax.xlane.f32.xlu0 %v228
    %v230 = vpop.xlane.xlu0 %229
    %v232 = vlaneseq
    %v233 = vshrl.u32 %v232, 7
    %v234 = vsub.s32 0, %v233
    %v235 = vrot.slane %v230, %v234
    %v236 = vlaneseq
    %v237 = vshrl.u32 %v236, 7
    %v238 = vsub.s32 1, %v237
    %v239 = vrot.slane %v230, %v238
    %v242 = vsub.f32 %v208, %v235
    %v243 = vsub.f32 %v211, %v239
    %v244 = vmul.f32 %v242, 1.442695
    %v245 = vpow.pop %v244
    %v246 = vmul.f32 %v243, 1.442695
    %v247 = vpow.pop %v246
    %250 = vset.pattern.permute.xlu0 0
    %251 = vperm.xlu0 %250, %v245
    %v252 = vpop.permute.xlu0 %251
    %253 = vset.pattern.permute.xlu0 0
    %254 = vperm.xlu0 %253, %v247
    %v255 = vpop.permute.xlu0 %254
    %v256 = vlaneseq
    %v257 = vshrl.u32 %v256, 7
    %v258 = vsub.s32 %v215, %v257
    %v259 = vrot.slane %v252, %v258
    %v260 = vlaneseq
    %v261 = vshrl.u32 %v260, 7
    %v262 = vsub.s32 %v215, %v261
    %v263 = vrot.slane %v255, %v262
    %v264 = vsel %vm224, %v263, %v259
    %v266 = vsel %vm227, %v264, 0.0
    %267 = vadd.xlane.f32.xlu0 %v266
    %v268 = vpop.xlane.xlu0 %267
    %v269 = vrcp.pop %v268
    %v270 = vmul.f32 1.0, %v269
    %v272 = vlaneseq
    %v273 = vshrl.u32 %v272, 7
    %v274 = vsub.s32 0, %v273
    %v275 = vrot.slane %v270, %v274
    %v276 = vlaneseq
    %v277 = vshrl.u32 %v276, 7
    %v278 = vsub.s32 1, %v277
    %v279 = vrot.slane %v270, %v278
    %v282 = vmul.f32 %v245, %v275
    %v283 = vmul.f32 %v247, %v279
    %285 = vset.pattern.permute.xlu0 0
    %286 = vperm.xlu0 %285, %v282
    %v287 = vpop.permute.xlu0 %286
    %290 = vset.pattern.permute.xlu0 0
    %291 = vperm.xlu0 %290, %v283
    %v292 = vpop.permute.xlu0 %291
    %v294 = vmul.f32 %v287, %v91
    %v295 = vmul.f32 %v292, %v92
    %v296 = vsel %vm97, %v294, 0.0
    %v297 = vrot.slane %v296, 4
    %v298 = vadd.f32 %v296, %v297
    %v299 = vrot.slane %v298, 2
    %v300 = vadd.f32 %v298, %v299
    %v301 = vrot.slane %v300, 1
    %v302 = vadd.f32 %v300, %v301
    %v303 = vsel %vm97, %v295, 0.0
    %v304 = vrot.slane %v303, 4
    %v305 = vadd.f32 %v303, %v304
    %v306 = vrot.slane %v305, 2
    %v307 = vadd.f32 %v305, %v306
    %v308 = vrot.slane %v307, 1
    %v309 = vadd.f32 %v307, %v308
    %v310 = vld [vmem:[#allocation8] sm:$0xff]
    %v311 = vld [vmem:[#allocation8 + $0x8] sm:$0xff]
    %v312 = vld [vmem:[#allocation8 + $0x10] sm:$0xff]
    %v313 = vld [vmem:[#allocation8 + $0x18] sm:$0xff]
    %v314 = vld [vmem:[#allocation10] sm:$0xff]
    %v315 = vld [vmem:[#allocation10 + $0x8] sm:$0xff]
    %v316 = vld [vmem:[#allocation10 + $0x10] sm:$0xff]
    %v317 = vld [vmem:[#allocation10 + $0x18] sm:$0xff]
    %318 = vmatprep.subr.mxu0 0.0
    %319 = vmatpush1.msra.mxu0 0.0
    %320 = vmatprep.subr.mxu0 0.0
    %321 = vmatpush1.msra.mxu0 0.0
    %322 = vmatprep.subr.mxu0 0.0
    %323 = vmatpush1.msra.mxu0 0.0
    %324 = vmatprep.subr.mxu0 0.0
    %325 = vmatpush1.msra.mxu0 0.0
    %326 = vmatprep.subr.mxu0 0.0
    %327 = vmatpush1.msra.mxu0 0.0
    %328 = vmatprep.subr.mxu0 0.0
    %329 = vmatpush1.msra.mxu0 0.0
    %330 = vmatprep.subr.mxu0 0.0
    %331 = vmatpush1.msra.mxu0 0.0
    %332 = vmatprep.subr.mxu0 0.0
    %333 = vmatpush1.msra.mxu0 0.0
    %334 = vmatprep.subr.mxu0 0.0
    %335 = vmatpush1.msra.mxu0 0.0
    %336 = vmatprep.subr.mxu0 0.0
    %337 = vmatpush1.msra.mxu0 0.0
    %338 = vmatprep.subr.mxu0 0.0
    %339 = vmatpush1.msra.mxu0 0.0
    %340 = vmatprep.subr.mxu0 0.0
    %341 = vmatpush1.msra.mxu0 0.0
    %342 = vmatprep.subr.mxu0 0.0
    %343 = vmatpush1.msra.mxu0 %v317
    %344 = vmatprep.subr.mxu0 0.0
    %345 = vmatpush1.msra.mxu0 %v316
    %346 = vmatprep.subr.mxu0 0.0
    %347 = vmatpush1.msra.mxu0 %v315
    %348 = vmatprep.subr.mxu0 0.0
    %349 = vmatpush1.msra.mxu0 %v314
    %350 = vmatprep.subr.mxu0 0.0
    %351 = vmatpush2.msra.mxu0 0.0
    %352 = vmatprep.subr.mxu0 0.0
    %353 = vmatpush2.msra.mxu0 0.0
    %354 = vmatprep.subr.mxu0 0.0
    %355 = vmatpush2.msra.mxu0 0.0
    %356 = vmatprep.subr.mxu0 0.0
    %357 = vmatpush2.msra.mxu0 0.0
    %358 = vmatprep.subr.mxu0 0.0
    %359 = vmatpush2.msra.mxu0 0.0
    %360 = vmatprep.subr.mxu0 0.0
    %361 = vmatpush2.msra.mxu0 0.0
    %362 = vmatprep.subr.mxu0 0.0
    %363 = vmatpush2.msra.mxu0 0.0
    %364 = vmatprep.subr.mxu0 0.0
    %365 = vmatpush2.msra.mxu0 0.0
    %366 = vmatprep.subr.mxu0 0.0
    %367 = vmatpush2.msra.mxu0 0.0
    %368 = vmatprep.subr.mxu0 0.0
    %369 = vmatpush2.msra.mxu0 0.0
    %370 = vmatprep.subr.mxu0 0.0
    %371 = vmatpush2.msra.mxu0 0.0
    %372 = vmatprep.subr.mxu0 0.0
    %373 = vmatpush2.msra.mxu0 0.0
    %374 = vmatprep.subr.mxu0 0.0
    %375 = vmatpush2.msra.mxu0 0.0
    %376 = vmatprep.subr.mxu0 0.0
    %377 = vmatpush2.msra.mxu0 0.0
    %378 = vmatprep.subr.mxu0 0.0
    %379 = vmatpush2.msra.mxu0 0.0
    %380 = vmatprep.subr.mxu0 0.0
    %381 = vmatpush2.msra.mxu0 0.0
    %382 = vmatprep.mubr.f32.mxu0 0.0
    %383 = vmatmul.mubr.f32.gmra.mxu0 %v99
    %v384 = vpop.f32.mrf.mxu0
    %v385 = vadd.f32 0.0, %v384
    %v386 = vpop.f32.mrf.mxu0
    %387 = vdwg.mxu0
    %v390 = vsel %vm224, %v309, %v302
    %v391 = vsel %vm97, %v390, 0
    %393 = vmatprep.subr.mxu0 0.0
    %394 = vmatpush1.msra.mxu0 0.0
    %395 = vmatprep.subr.mxu0 0.0
    %396 = vmatpush1.msra.mxu0 0.0
    %397 = vmatprep.subr.mxu0 0.0
    %398 = vmatpush1.msra.mxu0 0.0
    %399 = vmatprep.subr.mxu0 0.0
    %400 = vmatpush1.msra.mxu0 0.0
    %401 = vmatprep.subr.mxu0 0.0
    %402 = vmatpush1.msra.mxu0 0.0
    %403 = vmatprep.subr.mxu0 0.0
    %404 = vmatpush1.msra.mxu0 0.0
    %405 = vmatprep.subr.mxu0 0.0
    %406 = vmatpush1.msra.mxu0 0.0
    %407 = vmatprep.subr.mxu0 0.0
    %408 = vmatpush1.msra.mxu0 0.0
    %409 = vmatprep.subr.mxu0 0.0
    %410 = vmatpush1.msra.mxu0 0.0
    %411 = vmatprep.subr.mxu0 0.0
    %412 = vmatpush1.msra.mxu0 0.0
    %413 = vmatprep.subr.mxu0 0.0
    %414 = vmatpush1.msra.mxu0 0.0
    %415 = vmatprep.subr.mxu0 0.0
    %416 = vmatpush1.msra.mxu0 0.0
    %417 = vmatprep.subr.mxu0 0.0
    %418 = vmatpush1.msra.mxu0 %v313
    %419 = vmatprep.subr.mxu0 0.0
    %420 = vmatpush1.msra.mxu0 %v312
    %421 = vmatprep.subr.mxu0 0.0
    %422 = vmatpush1.msra.mxu0 %v311
    %423 = vmatprep.subr.mxu0 0.0
    %424 = vmatpush1.msra.mxu0 %v310
    %425 = vmatprep.subr.mxu0 0.0
    %426 = vmatpush2.msra.mxu0 0.0
    %427 = vmatprep.subr.mxu0 0.0
    %428 = vmatpush2.msra.mxu0 0.0
    %429 = vmatprep.subr.mxu0 0.0
    %430 = vmatpush2.msra.mxu0 0.0
    %431 = vmatprep.subr.mxu0 0.0
    %432 = vmatpush2.msra.mxu0 0.0
    %433 = vmatprep.subr.mxu0 0.0
    %434 = vmatpush2.msra.mxu0 0.0
    %435 = vmatprep.subr.mxu0 0.0
    %436 = vmatpush2.msra.mxu0 0.0
    %437 = vmatprep.subr.mxu0 0.0
    %438 = vmatpush2.msra.mxu0 0.0
    %439 = vmatprep.subr.mxu0 0.0
    %440 = vmatpush2.msra.mxu0 0.0
    %441 = vmatprep.subr.mxu0 0.0
    %442 = vmatpush2.msra.mxu0 0.0
    %443 = vmatprep.subr.mxu0 0.0
    %444 = vmatpush2.msra.mxu0 0.0
    %445 = vmatprep.subr.mxu0 0.0
    %446 = vmatpush2.msra.mxu0 0.0
    %447 = vmatprep.subr.mxu0 0.0
    %448 = vmatpush2.msra.mxu0 0.0
    %449 = vmatprep.subr.mxu0 0.0
    %450 = vmatpush2.msra.mxu0 0.0
    %451 = vmatprep.subr.mxu0 0.0
    %452 = vmatpush2.msra.mxu0 0.0
    %453 = vmatprep.subr.mxu0 0.0
    %454 = vmatpush2.msra.mxu0 0.0
    %455 = vmatprep.subr.mxu0 0.0
    %456 = vmatpush2.msra.mxu0 0.0
    %457 = vmatprep.mubr.f32.mxu0 0.0
    %458 = vmatmul.mubr.f32.gmra.mxu0 %v391
    %v459 = vpop.f32.mrf.mxu0
    %v460 = vadd.f32 %v385, %v459
    %v461 = vpop.f32.mrf.mxu0
    %462 = vdwg.mxu0
    %v463 = vtanh.pop %v460
    %vm464 = vcmask 254976
    %465 = vst.msk [vmem:[#allocation11] sm:$0x3] %vm464, %v463
    %v466 = vlaneseq
    %v467 = vshrl.u32 %v466, 7
    %v468 = vsub.s32 %v215, %v467
    %v469 = vrot.slane %v287, %v468
    %v470 = vlaneseq
    %v471 = vshrl.u32 %v470, 7
    %v472 = vsub.s32 %v215, %v471
    %v473 = vrot.slane %v292, %v472
    %v474 = vsel %vm224, %v473, %v469
    %476 = vst.msk [vmem:[#allocation12] sm:$0x3] %vm227, %v474
    // Predicated region
    $region42: #{tpu_custom_call.1} parent=1 // pred_check
      _
    $region43: #{tpu_custom_call.1} parent=1 // pred_check_branch
      %478 = sbr.rel (0) target = $region45
    $region44: #{tpu_custom_call.1} parent=1 // pred_region
      %s480 = ssub.s32 32, 32
      %481 = vsyncadd [#allocation4], %s480
      %s483 = sshll.u32 [#allocation11], 4
      %s484 = int_to_ptr.vmem [resolvable:$true] %s483
      %486 = dma.vmem_to_hbm [thread:$0]  %s484, 32, %s5, [#allocation4]
    $region45: #{tpu_custom_call.1} parent=1 // pred_fallthru
      _
    // Predicated region
    $region46: #{tpu_custom_call.1} parent=1 // pred_check
      _
    $region47: #{tpu_custom_call.1} parent=1 // pred_check_branch
      %488 = sbr.rel (0) target = $region49
    $region48: #{tpu_custom_call.1} parent=1 // pred_region
      %s490 = ssub.s32 32, 32
      %491 = vsyncadd [#allocation13], %s490
      %s493 = sshll.u32 [#allocation12], 4
      %s494 = int_to_ptr.vmem [resolvable:$true] %s493
      %496 = dma.vmem_to_hbm [thread:$0]  %s494, 32, %s6, [#allocation13]
    $region49: #{tpu_custom_call.1} parent=1 // pred_fallthru
      _
    // Predicated region
    $region50: #{tpu_custom_call.1} parent=1 // pred_check
      _
    $region51: #{tpu_custom_call.1} parent=1 // pred_check_branch
      %498 = sbr.rel (0) target = $region53
    $region52: #{tpu_custom_call.1} parent=1 // pred_region
      %499 = dma.done [#allocation4], 32
    $region53: #{tpu_custom_call.1} parent=1 // pred_fallthru
      _
    // Predicated region
    $region54: #{tpu_custom_call.1} parent=1 // pred_check
      _
    $region55: #{tpu_custom_call.1} parent=1 // pred_check_branch
      %501 = sbr.rel (0) target = $region57
    $region56: #{tpu_custom_call.1} parent=1 // pred_region
      %502 = dma.done [#allocation13], 32
    $region57: #{tpu_custom_call.1} parent=1 // pred_fallthru
      _
    %503 = vsyncpa [#allocation3], 1
    %504 = vsyncpa [#allocation6], 1
    %505 = vsyncpa [#allocation9], 1
    %506 = vsyncpa [#allocation4], 1
    %507 = vsyncpa [#allocation13], 1

</llo_original>
